<compile_context>
chip_gen: v7x
topology: tpu7x:2x2x1
jax: 0.10.0
libtpu: 0.0.40
codegen_flags: <defaults>
</compile_context>

<pallas_src>
import math

import jax
import jax.numpy as jnp
import numpy as np
from jax import lax
from jax.experimental import pallas as pl
from jax.experimental.pallas import tpu as pltpu


def _svm_kernel(xs_flat_ref, ws_flat_ref, x3_ref, ws_stack_ref, ws_wide_ref,
                out_ref, g_ref):
    # ---- output[b, c] = <ws[c], x[b]>_F : one MXU matmul, K = D*D lanes -------
    out_ref[...] = lax.dot_general(
        xs_flat_ref[...], ws_flat_ref[...],
        dimension_numbers=(((1,), (1,)), ((), ())),     # NT contraction on D*D
        preferred_element_type=jnp.float32,
    )

    # ---- g_invariant ----------------------------------------------------------
    d = x3_ref.shape[-1]
    num_classes = ws_stack_ref.shape[0] // d

    # center = mean over batch (single leading-axis reduction; symmetric).
    center = jnp.mean(x3_ref[...], axis=0)                       # (D, D) f32

    # P = [W_0 @ center ; W_1 @ center ; ...]   -> one (C*D, D) MXU matmul
    p_all = jnp.dot(ws_stack_ref[...], center,
                    preferred_element_type=jnp.float32)          # (C*D, D)
    # Q = [center @ W_0 | center @ W_1 | ...]   -> one (D, C*D) MXU matmul
    # Since W_c and center are symmetric, Q_c = P_c^T, so
    # trace((W_c @ center)^2) = <P_c, Q_c>_F with both blocks in natural layout
    # (no in-kernel transpose/reshape needed).
    q_wide = jnp.dot(center, ws_wide_ref[...],
                     preferred_element_type=jnp.float32)         # (D, C*D)

    g_sum = 0.0
    for c in range(num_classes):          # C tiny VPU mul+reduce steps (static)
        p_c = p_all[c * d:(c + 1) * d, :]                        # (D, D)
        q_c = q_wide[:, c * d:(c + 1) * d]                       # (D, D)
        g_sum = g_sum + jnp.sum(p_c * q_c)
    # (1,1) VMEM scalar output kept for lowering robustness (one masked store).
    g_ref[...] = (g_sum / num_classes)[None, None]


def svm_classifier_forward(mat_feats, W):
    """JAX wrapper: logmap_id + layout plumbing, then one Pallas kernel call."""
    mat_feats = mat_feats.astype(jnp.float32)
    W = W.astype(jnp.float32)

    # logmap_id on the SPD manifold = matrix logarithm at the identity.
    # TODO(synk): eigendecomposition has no Pallas primitive; done in plain JAX.
    evals, evecs = jnp.linalg.eigh(mat_feats)
    x = (evecs * jnp.log(evals)[..., None, :]) @ jnp.swapaxes(evecs, -1, -2)
    x = x.astype(jnp.float32)
    # x = V diag(log l) V^T is already symmetric; dropout is identity in eval
    # mode, so sym(dropout(x)) == x.  Symmetrize W once in XLA (cheap glue).
    ws = 0.5 * (W + jnp.swapaxes(W, -1, -2))

    B, D, _ = x.shape
    C = W.shape[0]

    # Lane-dense flattened views for the big MXU contraction (bf16 operands,
    # f32 accumulation) -- also halves their DMA bytes.
    xs_flat = x.reshape(B, D * D).astype(jnp.bfloat16)           # (B, D*D)
    ws_flat = ws.reshape(C, D * D).astype(jnp.bfloat16)          # (C, D*D)
    # Stacked / widened f32 views for the batched g-invariant matmuls.
    ws_stack = ws.reshape(C * D, D)                              # [W_0; W_1; ...]
    ws_wide = jnp.transpose(ws, (1, 0, 2)).reshape(D, C * D)     # [W_0 | W_1 | ...]

    # Whole problem is < 1 MiB, so a single no-grid invocation is used; a batch
    # grid (parallel dim semantics) only becomes worthwhile at much larger B.
    output, g = pl.pallas_call(
        _svm_kernel,
        out_shape=(
            jax.ShapeDtypeStruct((B, C), jnp.float32),
            jax.ShapeDtypeStruct((1, 1), jnp.float32),
        ),
        in_specs=[pl.BlockSpec(memory_space=pltpu.MemorySpace.VMEM)] * 5,
        out_specs=(
            pl.BlockSpec(memory_space=pltpu.MemorySpace.VMEM),
            pl.BlockSpec(memory_space=pltpu.MemorySpace.VMEM),
        ),
    )(xs_flat, ws_flat, x, ws_stack, ws_wide)
    return output, g[0, 0]


def _reference(mat_feats, W):
    """Pure-JAX reference mirroring the PyTorch forward (eval mode)."""
    evals, evecs = jnp.linalg.eigh(mat_feats.astype(jnp.float32))
    x = (evecs * jnp.log(evals)[..., None, :]) @ jnp.swapaxes(evecs, -1, -2)
    sym = lambda a: 0.5 * (a + jnp.swapaxes(a, -1, -2))
    xs = sym(x)
    ws = sym(W.astype(jnp.float32))
    proj = jnp.einsum("cij,bjk->bcik", ws, xs)
    output = jnp.trace(proj, axis1=-2, axis2=-1)
    center = xs.mean(axis=0)
    p = jnp.einsum("cij,jk->cik", ws, center)
    g = jnp.trace(jnp.einsum("cij,cjk->cik", p, p), axis1=-2, axis2=-1)
    return output, g.mean(-1)


if __name__ == "__main__":
    B, C, D = 8, 6, 32   # batch, num_classes, hidden_dims

    key = jax.random.PRNGKey(0)
    k1, k2 = jax.random.split(key)

    # Deterministic SPD input features.
    a = jax.random.normal(k1, (B, D, D), dtype=jnp.float32)
    mat_feats = a @ jnp.swapaxes(a, -1, -2) / D + jnp.eye(D, dtype=jnp.float32)[None]

    # glorot init for W (uniform(-s, s), s = sqrt(6 / (fan_in + fan_out))).
    s = math.sqrt(6.0 / (D + D))
    W = jax.random.uniform(k2, (C, D, D), dtype=jnp.float32, minval=-s, maxval=s)

    out, g = jax.block_until_ready(svm_classifier_forward(mat_feats, W))

    ref_out, ref_g = _reference(mat_feats, W)
    assert out.shape == (B, C) and g.shape == ()
    # Output matmul runs with bf16 operands (f32 accumulation) -> loosened atol.
    np.testing.assert_allclose(np.asarray(out), np.asarray(ref_out), rtol=2e-2, atol=5e-2)
    np.testing.assert_allclose(np.asarray(g), np.asarray(ref_g), rtol=2e-2, atol=2e-3)

    print("KERNEL_OK")
</pallas_src>

<mosaic_0001>
module attributes {stable_mosaic.version = 11 : i64} {
  func.func @_svm_kernel(%arg0: memref<8x1024xbf16, #tpu.memory_space<vmem>>, %arg1: memref<6x1024xbf16, #tpu.memory_space<vmem>>, %arg2: memref<8x32x32xf32, #tpu.memory_space<vmem>>, %arg3: memref<192x32xf32, #tpu.memory_space<vmem>>, %arg4: memref<32x192xf32, #tpu.memory_space<vmem>>, %arg5: memref<8x6xf32, #tpu.memory_space<vmem>>, %arg6: memref<1x1xf32, #tpu.memory_space<vmem>>) attributes {dimension_semantics = [], scalar_prefetch = 0 : i64, scratch_operands = 0 : i64, tpu.core_type = #tpu.core_type<tc>} {
    %c0 = arith.constant 0 : index
    %c0_0 = arith.constant 0 : index
    %0 = vector.load %arg0[%c0, %c0_0] : memref<8x1024xbf16, #tpu.memory_space<vmem>>, vector<8x1024xbf16>
    %c0_1 = arith.constant 0 : index
    %c0_2 = arith.constant 0 : index
    %1 = vector.load %arg1[%c0_1, %c0_2] : memref<6x1024xbf16, #tpu.memory_space<vmem>>, vector<6x1024xbf16>
    %cst = arith.constant dense<0.000000e+00> : vector<8x6xf32>
    %2 = tpu.matmul %0, %1, %cst {dimension_numbers = #tpu.dot_dimension_numbers<[1], [1], [0], [0], [0, 0, 1, 0], [], []>} : vector<8x1024xbf16>, vector<6x1024xbf16>, vector<8x6xf32> -> vector<8x6xf32>
    %c0_3 = arith.constant 0 : index
    %c0_4 = arith.constant 0 : index
    %3 = vector.load %arg5[%c0_3, %c0_4] : memref<8x6xf32, #tpu.memory_space<vmem>>, vector<8x6xf32>
    tpu.vector_store %arg5[%c0_3, %c0_4], %2 {strides = array<i32>} : memref<8x6xf32, #tpu.memory_space<vmem>>, vector<8x6xf32>,
    %c0_5 = arith.constant 0 : index
    %c0_6 = arith.constant 0 : index
    %c0_7 = arith.constant 0 : index
    %4 = vector.load %arg2[%c0_5, %c0_6, %c0_7] : memref<8x32x32xf32, #tpu.memory_space<vmem>>, vector<8x32x32xf32>
    %cst_8 = arith.constant dense<0.000000e+00> : vector<32x32xf32>
    %5 = vector.multi_reduction <add>, %4, %cst_8 [0] : vector<8x32x32xf32> to vector<32x32xf32>
    %cst_9 = arith.constant 8.000000e+00 : f32
    %6 = vector.broadcast %cst_9 : f32 to vector<32x32xf32>
    %7 = arith.divf %5, %6 : vector<32x32xf32>
    %c0_10 = arith.constant 0 : index
    %c0_11 = arith.constant 0 : index
    %8 = vector.load %arg3[%c0_10, %c0_11] : memref<192x32xf32, #tpu.memory_space<vmem>>, vector<192x32xf32>
    %cst_12 = arith.constant dense<0.000000e+00> : vector<192x32xf32>
    %9 = tpu.matmul %8, %7, %cst_12 {dimension_numbers = #tpu.dot_dimension_numbers<[1], [0], [0], [1], [0, 0, 1, 1], [], []>} : vector<192x32xf32>, vector<32x32xf32>, vector<192x32xf32> -> vector<192x32xf32>
    %c0_13 = arith.constant 0 : index
    %c0_14 = arith.constant 0 : index
    %10 = vector.load %arg4[%c0_13, %c0_14] : memref<32x192xf32, #tpu.memory_space<vmem>>, vector<32x192xf32>
    %cst_15 = arith.constant dense<0.000000e+00> : vector<32x192xf32>
    %11 = tpu.matmul %7, %10, %cst_15 {dimension_numbers = #tpu.dot_dimension_numbers<[1], [0], [0], [1], [0, 0, 1, 1], [], []>} : vector<32x32xf32>, vector<32x192xf32>, vector<32x192xf32> -> vector<32x192xf32>
    %12 = vector.extract_strided_slice %9 {offsets = [0, 0], sizes = [32, 32], strides = [1, 1]} : vector<192x32xf32> to vector<32x32xf32>
    %13 = vector.extract_strided_slice %11 {offsets = [0, 0], sizes = [32, 32], strides = [1, 1]} : vector<32x192xf32> to vector<32x32xf32>
    %14 = arith.mulf %12, %13 : vector<32x32xf32>
    %15 = vector.shape_cast %14 : vector<32x32xf32> to vector<1x32x32xf32>
    %cst_16 = arith.constant dense<0.000000e+00> : vector<1xf32>
    %16 = vector.multi_reduction <add>, %15, %cst_16 [1, 2] : vector<1x32x32xf32> to vector<1xf32>
    %17 = vector.shape_cast %16 : vector<1xf32> to vector<1x1x1xf32>
    %18 = vector.extract %17[0, 0, 0] : f32 from vector<1x1x1xf32>
    %cst_17 = arith.constant 0.000000e+00 : f32
    %19 = arith.addf %cst_17, %18 : f32
    %20 = vector.extract_strided_slice %9 {offsets = [32, 0], sizes = [32, 32], strides = [1, 1]} : vector<192x32xf32> to vector<32x32xf32>
    %21 = vector.extract_strided_slice %11 {offsets = [0, 32], sizes = [32, 32], strides = [1, 1]} : vector<32x192xf32> to vector<32x32xf32>
    %22 = arith.mulf %20, %21 : vector<32x32xf32>
    %23 = vector.shape_cast %22 : vector<32x32xf32> to vector<1x32x32xf32>
    %cst_18 = arith.constant dense<0.000000e+00> : vector<1xf32>
    %24 = vector.multi_reduction <add>, %23, %cst_18 [1, 2] : vector<1x32x32xf32> to vector<1xf32>
    %25 = vector.shape_cast %24 : vector<1xf32> to vector<1x1x1xf32>
    %26 = vector.extract %25[0, 0, 0] : f32 from vector<1x1x1xf32>
    %27 = arith.addf %19, %26 : f32
    %28 = vector.extract_strided_slice %9 {offsets = [64, 0], sizes = [32, 32], strides = [1, 1]} : vector<192x32xf32> to vector<32x32xf32>
    %29 = vector.extract_strided_slice %11 {offsets = [0, 64], sizes = [32, 32], strides = [1, 1]} : vector<32x192xf32> to vector<32x32xf32>
    %30 = arith.mulf %28, %29 : vector<32x32xf32>
    %31 = vector.shape_cast %30 : vector<32x32xf32> to vector<1x32x32xf32>
    %cst_19 = arith.constant dense<0.000000e+00> : vector<1xf32>
    %32 = vector.multi_reduction <add>, %31, %cst_19 [1, 2] : vector<1x32x32xf32> to vector<1xf32>
    %33 = vector.shape_cast %32 : vector<1xf32> to vector<1x1x1xf32>
    %34 = vector.extract %33[0, 0, 0] : f32 from vector<1x1x1xf32>
    %35 = arith.addf %27, %34 : f32
    %36 = vector.extract_strided_slice %9 {offsets = [96, 0], sizes = [32, 32], strides = [1, 1]} : vector<192x32xf32> to vector<32x32xf32>
    %37 = vector.extract_strided_slice %11 {offsets = [0, 96], sizes = [32, 32], strides = [1, 1]} : vector<32x192xf32> to vector<32x32xf32>
    %38 = arith.mulf %36, %37 : vector<32x32xf32>
    %39 = vector.shape_cast %38 : vector<32x32xf32> to vector<1x32x32xf32>
    %cst_20 = arith.constant dense<0.000000e+00> : vector<1xf32>
    %40 = vector.multi_reduction <add>, %39, %cst_20 [1, 2] : vector<1x32x32xf32> to vector<1xf32>
    %41 = vector.shape_cast %40 : vector<1xf32> to vector<1x1x1xf32>
    %42 = vector.extract %41[0, 0, 0] : f32 from vector<1x1x1xf32>
    %43 = arith.addf %35, %42 : f32
    %44 = vector.extract_strided_slice %9 {offsets = [128, 0], sizes = [32, 32], strides = [1, 1]} : vector<192x32xf32> to vector<32x32xf32>
    %45 = vector.extract_strided_slice %11 {offsets = [0, 128], sizes = [32, 32], strides = [1, 1]} : vector<32x192xf32> to vector<32x32xf32>
    %46 = arith.mulf %44, %45 : vector<32x32xf32>
    %47 = vector.shape_cast %46 : vector<32x32xf32> to vector<1x32x32xf32>
    %cst_21 = arith.constant dense<0.000000e+00> : vector<1xf32>
    %48 = vector.multi_reduction <add>, %47, %cst_21 [1, 2] : vector<1x32x32xf32> to vector<1xf32>
    %49 = vector.shape_cast %48 : vector<1xf32> to vector<1x1x1xf32>
    %50 = vector.extract %49[0, 0, 0] : f32 from vector<1x1x1xf32>
    %51 = arith.addf %43, %50 : f32
    %52 = vector.extract_strided_slice %9 {offsets = [160, 0], sizes = [32, 32], strides = [1, 1]} : vector<192x32xf32> to vector<32x32xf32>
    %53 = vector.extract_strided_slice %11 {offsets = [0, 160], sizes = [32, 32], strides = [1, 1]} : vector<32x192xf32> to vector<32x32xf32>
    %54 = arith.mulf %52, %53 : vector<32x32xf32>
    %55 = vector.shape_cast %54 : vector<32x32xf32> to vector<1x32x32xf32>
    %cst_22 = arith.constant dense<0.000000e+00> : vector<1xf32>
    %56 = vector.multi_reduction <add>, %55, %cst_22 [1, 2] : vector<1x32x32xf32> to vector<1xf32>
    %57 = vector.shape_cast %56 : vector<1xf32> to vector<1x1x1xf32>
    %58 = vector.extract %57[0, 0, 0] : f32 from vector<1x1x1xf32>
    %59 = arith.addf %51, %58 : f32
    %cst_23 = arith.constant 6.000000e+00 : f32
    %60 = arith.divf %59, %cst_23 : f32
    %61 = vector.broadcast %60 : f32 to vector<1x1xf32>
    %c0_24 = arith.constant 0 : index
    %c0_25 = arith.constant 0 : index
    %62 = vector.load %arg6[%c0_24, %c0_25] : memref<1x1xf32, #tpu.memory_space<vmem>>, vector<1x1xf32>
    tpu.vector_store %arg6[%c0_24, %c0_25], %61 {strides = array<i32>} : memref<1x1xf32, #tpu.memory_space<vmem>>, vector<1x1xf32>,
    return
  }
}

</mosaic_0001>

<llo_original>
// kernel: tpu_custom_call.1
$region0: #{tpu_custom_call.1}
  #allocation0 [shape = 'u32[]', space=smem, size = 0x4, offset = 0x4, fixed_abs, tag = 'smem constant byte address 0x4 - core index']
  #allocation1 [shape = 'u32[144,128]{1,0:T(1,128)}', space=vmem, size = 0x12000, scoped, tag = 'internal scratch']
  %s0 = inlined_call_operand.hbm [shape: bf16[8,1024], index: 0, kind: input, shape index: {}]
  %s1 = inlined_call_operand.hbm [shape: bf16[6,1024], index: 1, kind: input, shape index: {}]
  %s2 = inlined_call_operand.vmem [shape: f32[8,32,32], index: 2, kind: input, shape index: {}]
  %s3 = inlined_call_operand.vmem [shape: f32[192,32], index: 3, kind: input, shape index: {}]
  %s4 = inlined_call_operand.hbm [shape: f32[32,192], index: 4, kind: input, shape index: {}]
  %s5 = inlined_call_operand.hbm [shape: f32[8,6], index: 5, kind: output, shape index: {0}]
  %s6 = inlined_call_operand.hbm [shape: f32[1,1], index: 6, kind: output, shape index: {1}]
  %7 = xla_tuple %s5, %s6
  %s8 = sld [smem:[#allocation0]]
  $region50: #{tpu_custom_call.1} parent=0
    _
  %s10 = ssub.s32 1, %s8
  %s11 = scalar_select 0, %s10, %s8
  $region1: #{tpu_custom_call.1} parent=0
    #allocation2 [shape = 'u8[16384]{0}', space=vmem, size = 0x4000, scoped, tag = 'input window, operand 0, single buffered']
    #allocation3 [shape = 's32[1]{0}', space=sflag, size = 0x4, scoped, tag = 'scoped memory for tpu_custom_call.1']
    #allocation4 [shape = 's32[1]{0}', space=sflag, size = 0x4, scoped, tag = 'scoped memory for tpu_custom_call.1']
    #allocation5 [shape = 'u8[16384]{0}', space=vmem, size = 0x4000, scoped, tag = 'input window, operand 1, single buffered']
    #allocation6 [shape = 's32[1]{0}', space=sflag, size = 0x4, scoped, tag = 'scoped memory for tpu_custom_call.1']
    #allocation7 [shape = 'u8[32768]{0}', space=vmem, size = 0x8000, scoped, tag = 'input window, operand 4, single buffered']
    #allocation8 [shape = 'u8[4096]{0}', space=vmem, size = 0x1000, scoped, tag = 'output window, operand 0, single buffered']
    #allocation9 [shape = 'u8[512]{0}', space=vmem, size = 0x400, scoped, tag = 'output window, operand 1, single buffered']
    #allocation10 [shape = 's32[1]{0}', space=sflag, size = 0x4, scoped, tag = 'scoped memory for tpu_custom_call.1']
    %12 = vsyncpa [#allocation3], 0
    %13 = vsyncpa [#allocation6], 0
    %14 = vsyncpa [#allocation4], 0
    %15 = vsyncpa [#allocation10], 0
    // Predicated region
    $region2: #{tpu_custom_call.1} parent=1 // pred_check
      _
    $region3: #{tpu_custom_call.1} parent=1 // pred_check_branch
      %17 = sbr.rel (0) target = $region5
    $region4: #{tpu_custom_call.1} parent=1 // pred_region
      %s19 = ssub.s32 512, 512
      %20 = vsyncadd [#allocation3], %s19
      %s22 = sshll.u32 [#allocation2], 4
      %s23 = int_to_ptr.vmem [resolvable:$true] %s22
      %25 = dma.hbm_to_vmem [thread:$0]  %s0, 512, %s23, [#allocation3]
    $region5: #{tpu_custom_call.1} parent=1 // pred_fallthru
      _
    // Predicated region
    $region6: #{tpu_custom_call.1} parent=1 // pred_check
      _
    $region7: #{tpu_custom_call.1} parent=1 // pred_check_branch
      %27 = sbr.rel (0) target = $region9
    $region8: #{tpu_custom_call.1} parent=1 // pred_region
      %s29 = ssub.s32 512, 512
      %30 = vsyncadd [#allocation6], %s29
      %s32 = sshll.u32 [#allocation5], 4
      %s33 = int_to_ptr.vmem [resolvable:$true] %s32
      %35 = dma.hbm_to_vmem [thread:$0]  %s1, 512, %s33, [#allocation6]
    $region9: #{tpu_custom_call.1} parent=1 // pred_fallthru
      _
    // Predicated region
    $region10: #{tpu_custom_call.1} parent=1 // pred_check
      _
    $region11: #{tpu_custom_call.1} parent=1 // pred_check_branch
      %37 = sbr.rel (0) target = $region13
    $region12: #{tpu_custom_call.1} parent=1 // pred_region
      _
    $region13: #{tpu_custom_call.1} parent=1 // pred_fallthru
      _
    // Predicated region
    $region14: #{tpu_custom_call.1} parent=1 // pred_check
      _
    $region15: #{tpu_custom_call.1} parent=1 // pred_check_branch
      %39 = sbr.rel (0) target = $region17
    $region16: #{tpu_custom_call.1} parent=1 // pred_region
      _
    $region17: #{tpu_custom_call.1} parent=1 // pred_fallthru
      _
    // Predicated region
    $region18: #{tpu_custom_call.1} parent=1 // pred_check
      _
    $region19: #{tpu_custom_call.1} parent=1 // pred_check_branch
      %41 = sbr.rel (0) target = $region21
    $region20: #{tpu_custom_call.1} parent=1 // pred_region
      %s43 = ssub.s32 1024, 1024
      %44 = vsyncadd [#allocation6], %s43
      %s45 = sshll.u32 [#allocation7], 4
      %s46 = int_to_ptr.vmem [resolvable:$true] %s45
      %51 = dma.hbm_to_vmem [thread:$0]  %s4, 1024, %s46, [#allocation6], 256, 256, 16
    $region21: #{tpu_custom_call.1} parent=1 // pred_fallthru
      _
    // Predicated region
    $region22: #{tpu_custom_call.1} parent=1 // pred_check
      _
    $region23: #{tpu_custom_call.1} parent=1 // pred_check_branch
      %53 = sbr.rel (0) target = $region25
    $region24: #{tpu_custom_call.1} parent=1 // pred_region
      %54 = dma.done [#allocation3], 512
    $region25: #{tpu_custom_call.1} parent=1 // pred_fallthru
      _
    // Predicated region
    $region26: #{tpu_custom_call.1} parent=1 // pred_check
      _
    $region27: #{tpu_custom_call.1} parent=1 // pred_check_branch
      %56 = sbr.rel (0) target = $region29
    $region28: #{tpu_custom_call.1} parent=1 // pred_region
      %57 = dma.done [#allocation6], 512
    $region29: #{tpu_custom_call.1} parent=1 // pred_fallthru
      _
    // Predicated region
    $region30: #{tpu_custom_call.1} parent=1 // pred_check
      _
    $region31: #{tpu_custom_call.1} parent=1 // pred_check_branch
      %59 = sbr.rel (0) target = $region33
    $region32: #{tpu_custom_call.1} parent=1 // pred_region
      %60 = dma.done [#allocation6], 1024
    $region33: #{tpu_custom_call.1} parent=1 // pred_fallthru
      _
    %v62 = vld [vmem:[#allocation2] sm:$0xff]
    %v63 = vld [vmem:[#allocation2 + $0x8] sm:$0xff]
    %v64 = vld [vmem:[#allocation2 + $0x10] sm:$0xff]
    %v65 = vld [vmem:[#allocation2 + $0x18] sm:$0xff]
    %v66 = vld [vmem:[#allocation5] sm:$0x77]
    %v67 = vld [vmem:[#allocation5 + $0x8] sm:$0x77]
    %v68 = vld [vmem:[#allocation5 + $0x10] sm:$0x77]
    %v69 = vld [vmem:[#allocation5 + $0x18] sm:$0x77]
    %v74 = vunpack.c.l.b16 %v62
    %v75 = vunpack.c.h.b16 %v62
    %v76 = vunpack.c.l.b16 %v63
    %v77 = vunpack.c.h.b16 %v63
    %v78 = vunpack.c.l.b16 %v64
    %v79 = vunpack.c.h.b16 %v64
    %v80 = vunpack.c.l.b16 %v65
    %v81 = vunpack.c.h.b16 %v65
    %v82 = vpack.c.b16 %v74, %v74
    %v83 = vpack.c.b16 %v75, %v75
    %v84 = vpack.c.b16 %v76, %v76
    %v85 = vpack.c.b16 %v77, %v77
    %v86 = vpack.c.b16 %v78, %v78
    %v87 = vpack.c.b16 %v79, %v79
    %v88 = vpack.c.b16 %v80, %v80
    %v89 = vpack.c.b16 %v81, %v81
    %v102 = vunpack.c.l.b16 %v66
    %v103 = vunpack.c.h.b16 %v66
    %v104 = vunpack.c.l.b16 %v67
    %v105 = vunpack.c.h.b16 %v67
    %v106 = vunpack.c.l.b16 %v68
    %v107 = vunpack.c.h.b16 %v68
    %v108 = vunpack.c.l.b16 %v69
    %v109 = vunpack.c.h.b16 %v69
    %v110 = vpack.c.b16 %v102, %v102
    %v111 = vpack.c.b16 %v103, %v103
    %v112 = vpack.c.b16 %v104, %v104
    %v113 = vpack.c.b16 %v105, %v105
    %v114 = vpack.c.b16 %v106, %v106
    %v115 = vpack.c.b16 %v107, %v107
    %v116 = vpack.c.b16 %v108, %v108
    %v117 = vpack.c.b16 %v109, %v109
    %126 = vmatprep.subr.bf16.mxu0 %v111
    %127 = vmatpush1.bf16.xpose.msra.mxu0 %v110
    %128 = vmatprep.subr.bf16.mxu0 0
    %129 = vmatpush1.bf16.xpose.msra.mxu0 0
    %130 = vmatprep.subr.bf16.mxu0 0
    %131 = vmatpush1.bf16.xpose.msra.mxu0 0
    %132 = vmatprep.subr.bf16.mxu0 0
    %133 = vmatpush1.bf16.xpose.msra.mxu0 0
    %134 = vmatprep.subr.bf16.mxu0 0
    %135 = vmatpush1.bf16.xpose.msra.mxu0 0
    %136 = vmatprep.subr.bf16.mxu0 0
    %137 = vmatpush1.bf16.xpose.msra.mxu0 0
    %138 = vmatprep.subr.bf16.mxu0 0
    %139 = vmatpush1.bf16.xpose.msra.mxu0 0
    %140 = vmatprep.subr.bf16.mxu0 0
    %141 = vmatpush1.bf16.xpose.msra.mxu0 0
    %142 = vmatprep.subr.bf16.mxu0 0
    %143 = vmatpush1.bf16.xpose.msra.mxu0 0
    %144 = vmatprep.subr.bf16.mxu0 0
    %145 = vmatpush1.bf16.xpose.msra.mxu0 0
    %146 = vmatprep.subr.bf16.mxu0 0
    %147 = vmatpush1.bf16.xpose.msra.mxu0 0
    %148 = vmatprep.subr.bf16.mxu0 0
    %149 = vmatpush1.bf16.xpose.msra.mxu0 0
    %150 = vmatprep.subr.bf16.mxu0 0
    %151 = vmatpush1.bf16.xpose.msra.mxu0 0
    %152 = vmatprep.subr.bf16.mxu0 0
    %153 = vmatpush1.bf16.xpose.msra.mxu0 0
    %154 = vmatprep.subr.bf16.mxu0 0
    %155 = vmatpush1.bf16.xpose.msra.mxu0 0
    %156 = vmatprep.subr.bf16.mxu0 0
    %157 = vmatpush1.bf16.xpose.msra.mxu0 0
    %158 = vmatprep.mubr.bf16.mxu0 %v83
    %159 = vmatmul.mubr.bf16.gmra.mrb[0].mxu0 %v82
    %v160 = vpop.f32.mrb[0].mxu0
    %v161 = vadd.f32 0.0, %v160
    %v162 = vpop.f32.mrb[0].mxu0
    %v163 = vpop.f32.mrb[0].mxu0
    %v164 = vpop.f32.mrb[0].mxu0
    %165 = vdwg.mxu0
    %166 = vmatprep.subr.bf16.mxu0 %v113
    %167 = vmatpush1.bf16.xpose.msra.mxu0 %v112
    %168 = vmatprep.subr.bf16.mxu0 0
    %169 = vmatpush1.bf16.xpose.msra.mxu0 0
    %170 = vmatprep.subr.bf16.mxu0 0
    %171 = vmatpush1.bf16.xpose.msra.mxu0 0
    %172 = vmatprep.subr.bf16.mxu0 0
    %173 = vmatpush1.bf16.xpose.msra.mxu0 0
    %174 = vmatprep.subr.bf16.mxu0 0
    %175 = vmatpush1.bf16.xpose.msra.mxu0 0
    %176 = vmatprep.subr.bf16.mxu0 0
    %177 = vmatpush1.bf16.xpose.msra.mxu0 0
    %178 = vmatprep.subr.bf16.mxu0 0
    %179 = vmatpush1.bf16.xpose.msra.mxu0 0
    %180 = vmatprep.subr.bf16.mxu0 0
    %181 = vmatpush1.bf16.xpose.msra.mxu0 0
    %182 = vmatprep.subr.bf16.mxu0 0
    %183 = vmatpush1.bf16.xpose.msra.mxu0 0
    %184 = vmatprep.subr.bf16.mxu0 0
    %185 = vmatpush1.bf16.xpose.msra.mxu0 0
    %186 = vmatprep.subr.bf16.mxu0 0
    %187 = vmatpush1.bf16.xpose.msra.mxu0 0
    %188 = vmatprep.subr.bf16.mxu0 0
    %189 = vmatpush1.bf16.xpose.msra.mxu0 0
    %190 = vmatprep.subr.bf16.mxu0 0
    %191 = vmatpush1.bf16.xpose.msra.mxu0 0
    %192 = vmatprep.subr.bf16.mxu0 0
    %193 = vmatpush1.bf16.xpose.msra.mxu0 0
    %194 = vmatprep.subr.bf16.mxu0 0
    %195 = vmatpush1.bf16.xpose.msra.mxu0 0
    %196 = vmatprep.subr.bf16.mxu0 0
    %197 = vmatpush1.bf16.xpose.msra.mxu0 0
    %198 = vmatprep.mubr.bf16.mxu0 %v85
    %199 = vmatmul.mubr.bf16.gmra.mrb[0].mxu0 %v84
    %v200 = vpop.f32.mrb[0].mxu0
    %v201 = vadd.f32 %v161, %v200
    %v202 = vpop.f32.mrb[0].mxu0
    %v203 = vpop.f32.mrb[0].mxu0
    %v204 = vpop.f32.mrb[0].mxu0
    %205 = vdwg.mxu0
    %206 = vmatprep.subr.bf16.mxu0 %v115
    %207 = vmatpush1.bf16.xpose.msra.mxu0 %v114
    %208 = vmatprep.subr.bf16.mxu0 0
    %209 = vmatpush1.bf16.xpose.msra.mxu0 0
    %210 = vmatprep.subr.bf16.mxu0 0
    %211 = vmatpush1.bf16.xpose.msra.mxu0 0
    %212 = vmatprep.subr.bf16.mxu0 0
    %213 = vmatpush1.bf16.xpose.msra.mxu0 0
    %214 = vmatprep.subr.bf16.mxu0 0
    %215 = vmatpush1.bf16.xpose.msra.mxu0 0
    %216 = vmatprep.subr.bf16.mxu0 0
    %217 = vmatpush1.bf16.xpose.msra.mxu0 0
    %218 = vmatprep.subr.bf16.mxu0 0
    %219 = vmatpush1.bf16.xpose.msra.mxu0 0
    %220 = vmatprep.subr.bf16.mxu0 0
    %221 = vmatpush1.bf16.xpose.msra.mxu0 0
    %222 = vmatprep.subr.bf16.mxu0 0
    %223 = vmatpush1.bf16.xpose.msra.mxu0 0
    %224 = vmatprep.subr.bf16.mxu0 0
    %225 = vmatpush1.bf16.xpose.msra.mxu0 0
    %226 = vmatprep.subr.bf16.mxu0 0
    %227 = vmatpush1.bf16.xpose.msra.mxu0 0
    %228 = vmatprep.subr.bf16.mxu0 0
    %229 = vmatpush1.bf16.xpose.msra.mxu0 0
    %230 = vmatprep.subr.bf16.mxu0 0
    %231 = vmatpush1.bf16.xpose.msra.mxu0 0
    %232 = vmatprep.subr.bf16.mxu0 0
    %233 = vmatpush1.bf16.xpose.msra.mxu0 0
    %234 = vmatprep.subr.bf16.mxu0 0
    %235 = vmatpush1.bf16.xpose.msra.mxu0 0
    %236 = vmatprep.subr.bf16.mxu0 0
    %237 = vmatpush1.bf16.xpose.msra.mxu0 0
    %238 = vmatprep.mubr.bf16.mxu0 %v87
    %239 = vmatmul.mubr.bf16.gmra.mrb[0].mxu0 %v86
    %v240 = vpop.f32.mrb[0].mxu0
    %v241 = vadd.f32 %v201, %v240
    %v242 = vpop.f32.mrb[0].mxu0
    %v243 = vpop.f32.mrb[0].mxu0
    %v244 = vpop.f32.mrb[0].mxu0
    %245 = vdwg.mxu0
    %246 = vmatprep.subr.bf16.mxu0 %v117
    %247 = vmatpush1.bf16.xpose.msra.mxu0 %v116
    %248 = vmatprep.subr.bf16.mxu0 0
    %249 = vmatpush1.bf16.xpose.msra.mxu0 0
    %250 = vmatprep.subr.bf16.mxu0 0
    %251 = vmatpush1.bf16.xpose.msra.mxu0 0
    %252 = vmatprep.subr.bf16.mxu0 0
    %253 = vmatpush1.bf16.xpose.msra.mxu0 0
    %254 = vmatprep.subr.bf16.mxu0 0
    %255 = vmatpush1.bf16.xpose.msra.mxu0 0
    %256 = vmatprep.subr.bf16.mxu0 0
    %257 = vmatpush1.bf16.xpose.msra.mxu0 0
    %258 = vmatprep.subr.bf16.mxu0 0
    %259 = vmatpush1.bf16.xpose.msra.mxu0 0
    %260 = vmatprep.subr.bf16.mxu0 0
    %261 = vmatpush1.bf16.xpose.msra.mxu0 0
    %262 = vmatprep.subr.bf16.mxu0 0
    %263 = vmatpush1.bf16.xpose.msra.mxu0 0
    %264 = vmatprep.subr.bf16.mxu0 0
    %265 = vmatpush1.bf16.xpose.msra.mxu0 0
    %266 = vmatprep.subr.bf16.mxu0 0
    %267 = vmatpush1.bf16.xpose.msra.mxu0 0
    %268 = vmatprep.subr.bf16.mxu0 0
    %269 = vmatpush1.bf16.xpose.msra.mxu0 0
    %270 = vmatprep.subr.bf16.mxu0 0
    %271 = vmatpush1.bf16.xpose.msra.mxu0 0
    %272 = vmatprep.subr.bf16.mxu0 0
    %273 = vmatpush1.bf16.xpose.msra.mxu0 0
    %274 = vmatprep.subr.bf16.mxu0 0
    %275 = vmatpush1.bf16.xpose.msra.mxu0 0
    %276 = vmatprep.subr.bf16.mxu0 0
    %277 = vmatpush1.bf16.xpose.msra.mxu0 0
    %278 = vmatprep.mubr.bf16.mxu0 %v89
    %279 = vmatmul.mubr.bf16.gmra.mrb[0].mxu0 %v88
    %v280 = vpop.f32.mrb[0].mxu0
    %v281 = vadd.f32 %v241, %v280
    %v282 = vpop.f32.mrb[0].mxu0
    %v283 = vpop.f32.mrb[0].mxu0
    %v284 = vpop.f32.mrb[0].mxu0
    %285 = vdwg.mxu0
    %vm286 = vcmask 48128
    %287 = vst.msk [vmem:[#allocation8] sm:$0xff] %vm286, %v281
    %v288 = vld [vmem:[%s2] sm:$0xff]
    %v289 = vld [vmem:[%s2 + $0x8] sm:$0xff]
    %v290 = vld [vmem:[%s2 + $0x10] sm:$0xff]
    %v291 = vld [vmem:[%s2 + $0x18] sm:$0xff]
    %v292 = vld [vmem:[%s2 + $0x20] sm:$0xff]
    %v293 = vld [vmem:[%s2 + $0x28] sm:$0xff]
    %v294 = vld [vmem:[%s2 + $0x30] sm:$0xff]
    %v295 = vld [vmem:[%s2 + $0x38] sm:$0xff]
    %v296 = vld [vmem:[%s2 + $0x40] sm:$0xff]
    %v297 = vld [vmem:[%s2 + $0x48] sm:$0xff]
    %v298 = vld [vmem:[%s2 + $0x50] sm:$0xff]
    %v299 = vld [vmem:[%s2 + $0x58] sm:$0xff]
    %v300 = vld [vmem:[%s2 + $0x60] sm:$0xff]
    %v301 = vld [vmem:[%s2 + $0x68] sm:$0xff]
    %v302 = vld [vmem:[%s2 + $0x70] sm:$0xff]
    %v303 = vld [vmem:[%s2 + $0x78] sm:$0xff]
    %v304 = vld [vmem:[%s2 + $0x80] sm:$0xff]
    %v305 = vld [vmem:[%s2 + $0x88] sm:$0xff]
    %v306 = vld [vmem:[%s2 + $0x90] sm:$0xff]
    %v307 = vld [vmem:[%s2 + $0x98] sm:$0xff]
    %v308 = vld [vmem:[%s2 + $0xa0] sm:$0xff]
    %v309 = vld [vmem:[%s2 + $0xa8] sm:$0xff]
    %v310 = vld [vmem:[%s2 + $0xb0] sm:$0xff]
    %v311 = vld [vmem:[%s2 + $0xb8] sm:$0xff]
    %v312 = vld [vmem:[%s2 + $0xc0] sm:$0xff]
    %v313 = vld [vmem:[%s2 + $0xc8] sm:$0xff]
    %v314 = vld [vmem:[%s2 + $0xd0] sm:$0xff]
    %v315 = vld [vmem:[%s2 + $0xd8] sm:$0xff]
    %v316 = vld [vmem:[%s2 + $0xe0] sm:$0xff]
    %v317 = vld [vmem:[%s2 + $0xe8] sm:$0xff]
    %v318 = vld [vmem:[%s2 + $0xf0] sm:$0xff]
    %v319 = vld [vmem:[%s2 + $0xf8] sm:$0xff]
    %vm320 = vcmask 261120
    %v321 = vsel %vm320, %v288, 0.0
    %v322 = vsel %vm320, %v292, 0.0
    %v323 = vadd.f32 %v321, %v322
    %v324 = vsel %vm320, %v296, 0.0
    %v325 = vadd.f32 %v323, %v324
    %v326 = vsel %vm320, %v300, 0.0
    %v327 = vadd.f32 %v325, %v326
    %v328 = vsel %vm320, %v304, 0.0
    %v329 = vadd.f32 %v327, %v328
    %v330 = vsel %vm320, %v308, 0.0
    %v331 = vadd.f32 %v329, %v330
    %v332 = vsel %vm320, %v312, 0.0
    %v333 = vadd.f32 %v331, %v332
    %v334 = vsel %vm320, %v316, 0.0
    %v335 = vadd.f32 %v333, %v334
    %v336 = vsel %vm320, %v289, 0.0
    %v337 = vsel %vm320, %v293, 0.0
    %v338 = vadd.f32 %v336, %v337
    %v339 = vsel %vm320, %v297, 0.0
    %v340 = vadd.f32 %v338, %v339
    %v341 = vsel %vm320, %v301, 0.0
    %v342 = vadd.f32 %v340, %v341
    %v343 = vsel %vm320, %v305, 0.0
    %v344 = vadd.f32 %v342, %v343
    %v345 = vsel %vm320, %v309, 0.0
    %v346 = vadd.f32 %v344, %v345
    %v347 = vsel %vm320, %v313, 0.0
    %v348 = vadd.f32 %v346, %v347
    %v349 = vsel %vm320, %v317, 0.0
    %v350 = vadd.f32 %v348, %v349
    %v351 = vsel %vm320, %v290, 0.0
    %v352 = vsel %vm320, %v294, 0.0
    %v353 = vadd.f32 %v351, %v352
    %v354 = vsel %vm320, %v298, 0.0
    %v355 = vadd.f32 %v353, %v354
    %v356 = vsel %vm320, %v302, 0.0
    %v357 = vadd.f32 %v355, %v356
    %v358 = vsel %vm320, %v306, 0.0
    %v359 = vadd.f32 %v357, %v358
    %v360 = vsel %vm320, %v310, 0.0
    %v361 = vadd.f32 %v359, %v360
    %v362 = vsel %vm320, %v314, 0.0
    %v363 = vadd.f32 %v361, %v362
    %v364 = vsel %vm320, %v318, 0.0
    %v365 = vadd.f32 %v363, %v364
    %v366 = vsel %vm320, %v291, 0.0
    %v367 = vsel %vm320, %v295, 0.0
    %v368 = vadd.f32 %v366, %v367
    %v369 = vsel %vm320, %v299, 0.0
    %v370 = vadd.f32 %v368, %v369
    %v371 = vsel %vm320, %v303, 0.0
    %v372 = vadd.f32 %v370, %v371
    %v373 = vsel %vm320, %v307, 0.0
    %v374 = vadd.f32 %v372, %v373
    %v375 = vsel %vm320, %v311, 0.0
    %v376 = vadd.f32 %v374, %v375
    %v377 = vsel %vm320, %v315, 0.0
    %v378 = vadd.f32 %v376, %v377
    %v379 = vsel %vm320, %v319, 0.0
    %v380 = vadd.f32 %v378, %v379
    %v381 = vrcp.pop 8.0
    %v382 = vmul.f32 %v335, %v381
    %v383 = vmul.f32 %v350, %v381
    %v384 = vmul.f32 %v365, %v381
    %v385 = vmul.f32 %v380, %v381
    %v386 = vld [vmem:[%s3] sm:$0xff]
    %v387 = vld [vmem:[%s3 + $0x8] sm:$0xff]
    %v388 = vld [vmem:[%s3 + $0x10] sm:$0xff]
    %v389 = vld [vmem:[%s3 + $0x18] sm:$0xff]
    %v390 = vld [vmem:[%s3 + $0x20] sm:$0xff]
    %v391 = vld [vmem:[%s3 + $0x28] sm:$0xff]
    %v392 = vld [vmem:[%s3 + $0x30] sm:$0xff]
    %v393 = vld [vmem:[%s3 + $0x38] sm:$0xff]
    %v394 = vld [vmem:[%s3 + $0x40] sm:$0xff]
    %v395 = vld [vmem:[%s3 + $0x48] sm:$0xff]
    %v396 = vld [vmem:[%s3 + $0x50] sm:$0xff]
    %v397 = vld [vmem:[%s3 + $0x58] sm:$0xff]
    %v398 = vld [vmem:[%s3 + $0x60] sm:$0xff]
    %v399 = vld [vmem:[%s3 + $0x68] sm:$0xff]
    %v400 = vld [vmem:[%s3 + $0x70] sm:$0xff]
    %v401 = vld [vmem:[%s3 + $0x78] sm:$0xff]
    %v402 = vld [vmem:[%s3 + $0x80] sm:$0xff]
    %v403 = vld [vmem:[%s3 + $0x88] sm:$0xff]
    %v404 = vld [vmem:[%s3 + $0x90] sm:$0xff]
    %v405 = vld [vmem:[%s3 + $0x98] sm:$0xff]
    %v406 = vld [vmem:[%s3 + $0xa0] sm:$0xff]
    %v407 = vld [vmem:[%s3 + $0xa8] sm:$0xff]
    %v408 = vld [vmem:[%s3 + $0xb0] sm:$0xff]
    %v409 = vld [vmem:[%s3 + $0xb8] sm:$0xff]
    %v411 = vsel %vm320, %v386, 0
    %v414 = vsel %vm320, %v387, 0
    %v417 = vsel %vm320, %v388, 0
    %v420 = vsel %vm320, %v389, 0
    %v423 = vsel %vm320, %v390, 0
    %v426 = vsel %vm320, %v391, 0
    %v429 = vsel %vm320, %v392, 0
    %v432 = vsel %vm320, %v393, 0
    %v435 = vsel %vm320, %v394, 0
    %v438 = vsel %vm320, %v395, 0
    %v441 = vsel %vm320, %v396, 0
    %v444 = vsel %vm320, %v397, 0
    %v447 = vsel %vm320, %v398, 0
    %v450 = vsel %vm320, %v399, 0
    %v453 = vsel %vm320, %v400, 0
    %v456 = vsel %vm320, %v401, 0
    %v459 = vsel %vm320, %v402, 0
    %v462 = vsel %vm320, %v403, 0
    %v465 = vsel %vm320, %v404, 0
    %v468 = vsel %vm320, %v405, 0
    %v471 = vsel %vm320, %v406, 0
    %v474 = vsel %vm320, %v407, 0
    %v477 = vsel %vm320, %v408, 0
    %v480 = vsel %vm320, %v409, 0
    %482 = vmatprep.subr.mxu0 0.0
    %483 = vmatpush1.msra.mxu0 %v382
    %484 = vmatprep.subr.mxu0 0.0
    %485 = vmatpush1.msra.mxu0 %v383
    %486 = vmatprep.subr.mxu0 0.0
    %487 = vmatpush1.msra.mxu0 %v384
    %488 = vmatprep.subr.mxu0 0.0
    %489 = vmatpush1.msra.mxu0 %v385
    %490 = vmatprep.subr.mxu0 0.0
    %491 = vmatpush1.msra.mxu0 0.0
    %492 = vmatprep.subr.mxu0 0.0
    %493 = vmatpush1.msra.mxu0 0.0
    %494 = vmatprep.subr.mxu0 0.0
    %495 = vmatpush1.msra.mxu0 0.0
    %496 = vmatprep.subr.mxu0 0.0
    %497 = vmatpush1.msra.mxu0 0.0
    %498 = vmatprep.subr.mxu0 0.0
    %499 = vmatpush1.msra.mxu0 0.0
    %500 = vmatprep.subr.mxu0 0.0
    %501 = vmatpush1.msra.mxu0 0.0
    %502 = vmatprep.subr.mxu0 0.0
    %503 = vmatpush1.msra.mxu0 0.0
    %504 = vmatprep.subr.mxu0 0.0
    %505 = vmatpush1.msra.mxu0 0.0
    %506 = vmatprep.subr.mxu0 0.0
    %507 = vmatpush1.msra.mxu0 0.0
    %508 = vmatprep.subr.mxu0 0.0
    %509 = vmatpush1.msra.mxu0 0.0
    %510 = vmatprep.subr.mxu0 0.0
    %511 = vmatpush1.msra.mxu0 0.0
    %512 = vmatprep.subr.mxu0 0.0
    %513 = vmatpush1.msra.mxu0 0.0
    %514 = vmatprep.subr.mxu0 0.0
    %515 = vmatpush1.msra.mxu0 0.0
    %516 = vmatprep.subr.mxu0 0.0
    %517 = vmatpush1.msra.mxu0 0.0
    %518 = vmatprep.subr.mxu0 0.0
    %519 = vmatpush1.msra.mxu0 0.0
    %520 = vmatprep.subr.mxu0 0.0
    %521 = vmatpush1.msra.mxu0 0.0
    %522 = vmatprep.subr.mxu0 0.0
    %523 = vmatpush1.msra.mxu0 0.0
    %524 = vmatprep.subr.mxu0 0.0
    %525 = vmatpush1.msra.mxu0 0.0
    %526 = vmatprep.subr.mxu0 0.0
    %527 = vmatpush1.msra.mxu0 0.0
    %528 = vmatprep.subr.mxu0 0.0
    %529 = vmatpush1.msra.mxu0 0.0
    %530 = vmatprep.subr.mxu0 0.0
    %531 = vmatpush1.msra.mxu0 0.0
    %532 = vmatprep.subr.mxu0 0.0
    %533 = vmatpush1.msra.mxu0 0.0
    %534 = vmatprep.subr.mxu0 0.0
    %535 = vmatpush1.msra.mxu0 0.0
    %536 = vmatprep.subr.mxu0 0.0
    %537 = vmatpush1.msra.mxu0 0.0
    %538 = vmatprep.subr.mxu0 0.0
    %539 = vmatpush1.msra.mxu0 0.0
    %540 = vmatprep.subr.mxu0 0.0
    %541 = vmatpush1.msra.mxu0 0.0
    %542 = vmatprep.subr.mxu0 0.0
    %543 = vmatpush1.msra.mxu0 0.0
    %544 = vmatprep.subr.mxu0 0.0
    %545 = vmatpush1.msra.mxu0 0.0
    %546 = vmatprep.mubr.f32.mxu0 0.0
    %547 = vmatmul.mubr.f32.gmra.mrb[0].mxu0 %v411
    %v548 = vpop.f32.mrb[0].mxu0
    %v549 = vadd.f32 0.0, %v548
    %v550 = vpop.f32.mrb[0].mxu0
    %551 = vmatprep.mubr.f32.mxu0 0.0
    %552 = vmatmul.mubr.f32.gmra.mrb[0].mxu0 %v414
    %v553 = vpop.f32.mrb[0].mxu0
    %v554 = vadd.f32 0.0, %v553
    %v555 = vpop.f32.mrb[0].mxu0
    %556 = vmatprep.mubr.f32.mxu0 0.0
    %557 = vmatmul.mubr.f32.gmra.mrb[0].mxu0 %v417
    %v558 = vpop.f32.mrb[0].mxu0
    %v559 = vadd.f32 0.0, %v558
    %v560 = vpop.f32.mrb[0].mxu0
    %561 = vmatprep.mubr.f32.mxu0 0.0
    %562 = vmatmul.mubr.f32.gmra.mrb[0].mxu0 %v420
    %v563 = vpop.f32.mrb[0].mxu0
    %v564 = vadd.f32 0.0, %v563
    %v565 = vpop.f32.mrb[0].mxu0
    %566 = vmatprep.mubr.f32.mxu0 0.0
    %567 = vmatmul.mubr.f32.gmra.mrb[0].mxu0 %v423
    %v568 = vpop.f32.mrb[0].mxu0
    %v569 = vadd.f32 0.0, %v568
    %v570 = vpop.f32.mrb[0].mxu0
    %571 = vmatprep.mubr.f32.mxu0 0.0
    %572 = vmatmul.mubr.f32.gmra.mrb[0].mxu0 %v426
    %v573 = vpop.f32.mrb[0].mxu0
    %v574 = vadd.f32 0.0, %v573
    %v575 = vpop.f32.mrb[0].mxu0
    %576 = vmatprep.mubr.f32.mxu0 0.0
    %577 = vmatmul.mubr.f32.gmra.mrb[0].mxu0 %v429
    %v578 = vpop.f32.mrb[0].mxu0
    %v579 = vadd.f32 0.0, %v578
    %v580 = vpop.f32.mrb[0].mxu0
    %581 = vmatprep.mubr.f32.mxu0 0.0
    %582 = vmatmul.mubr.f32.gmra.mrb[0].mxu0 %v432
    %v583 = vpop.f32.mrb[0].mxu0
    %v584 = vadd.f32 0.0, %v583
    %v585 = vpop.f32.mrb[0].mxu0
    %586 = vmatprep.mubr.f32.mxu0 0.0
    %587 = vmatmul.mubr.f32.gmra.mrb[0].mxu0 %v435
    %v588 = vpop.f32.mrb[0].mxu0
    %v589 = vadd.f32 0.0, %v588
    %v590 = vpop.f32.mrb[0].mxu0
    %591 = vmatprep.mubr.f32.mxu0 0.0
    %592 = vmatmul.mubr.f32.gmra.mrb[0].mxu0 %v438
    %v593 = vpop.f32.mrb[0].mxu0
    %v594 = vadd.f32 0.0, %v593
    %v595 = vpop.f32.mrb[0].mxu0
    %596 = vmatprep.mubr.f32.mxu0 0.0
    %597 = vmatmul.mubr.f32.gmra.mrb[0].mxu0 %v441
    %v598 = vpop.f32.mrb[0].mxu0
    %v599 = vadd.f32 0.0, %v598
    %v600 = vpop.f32.mrb[0].mxu0
    %601 = vmatprep.mubr.f32.mxu0 0.0
    %602 = vmatmul.mubr.f32.gmra.mrb[0].mxu0 %v444
    %v603 = vpop.f32.mrb[0].mxu0
    %v604 = vadd.f32 0.0, %v603
    %v605 = vpop.f32.mrb[0].mxu0
    %606 = vmatprep.mubr.f32.mxu0 0.0
    %607 = vmatmul.mubr.f32.gmra.mrb[0].mxu0 %v447
    %v608 = vpop.f32.mrb[0].mxu0
    %v609 = vadd.f32 0.0, %v608
    %v610 = vpop.f32.mrb[0].mxu0
    %611 = vmatprep.mubr.f32.mxu0 0.0
    %612 = vmatmul.mubr.f32.gmra.mrb[0].mxu0 %v450
    %v613 = vpop.f32.mrb[0].mxu0
    %v614 = vadd.f32 0.0, %v613
    %v615 = vpop.f32.mrb[0].mxu0
    %616 = vmatprep.mubr.f32.mxu0 0.0
    %617 = vmatmul.mubr.f32.gmra.mrb[0].mxu0 %v453
    %v618 = vpop.f32.mrb[0].mxu0
    %v619 = vadd.f32 0.0, %v618
    %v620 = vpop.f32.mrb[0].mxu0
    %621 = vmatprep.mubr.f32.mxu0 0.0
    %622 = vmatmul.mubr.f32.gmra.mrb[0].mxu0 %v456
    %v623 = vpop.f32.mrb[0].mxu0
    %v624 = vadd.f32 0.0, %v623
    %v625 = vpop.f32.mrb[0].mxu0
    %626 = vmatprep.mubr.f32.mxu0 0.0
    %627 = vmatmul.mubr.f32.gmra.mrb[0].mxu0 %v459
    %v628 = vpop.f32.mrb[0].mxu0
    %v629 = vadd.f32 0.0, %v628
    %v630 = vpop.f32.mrb[0].mxu0
    %631 = vmatprep.mubr.f32.mxu0 0.0
    %632 = vmatmul.mubr.f32.gmra.mrb[0].mxu0 %v462
    %v633 = vpop.f32.mrb[0].mxu0
    %v634 = vadd.f32 0.0, %v633
    %v635 = vpop.f32.mrb[0].mxu0
    %636 = vmatprep.mubr.f32.mxu0 0.0
    %637 = vmatmul.mubr.f32.gmra.mrb[0].mxu0 %v465
    %v638 = vpop.f32.mrb[0].mxu0
    %v639 = vadd.f32 0.0, %v638
    %v640 = vpop.f32.mrb[0].mxu0
    %641 = vmatprep.mubr.f32.mxu0 0.0
    %642 = vmatmul.mubr.f32.gmra.mrb[0].mxu0 %v468
    %v643 = vpop.f32.mrb[0].mxu0
    %v644 = vadd.f32 0.0, %v643
    %v645 = vpop.f32.mrb[0].mxu0
    %646 = vmatprep.mubr.f32.mxu0 0.0
    %647 = vmatmul.mubr.f32.gmra.mrb[0].mxu0 %v471
    %v648 = vpop.f32.mrb[0].mxu0
    %v649 = vadd.f32 0.0, %v648
    %v650 = vpop.f32.mrb[0].mxu0
    %651 = vmatprep.mubr.f32.mxu0 0.0
    %652 = vmatmul.mubr.f32.gmra.mrb[0].mxu0 %v474
    %v653 = vpop.f32.mrb[0].mxu0
    %v654 = vadd.f32 0.0, %v653
    %v655 = vpop.f32.mrb[0].mxu0
    %656 = vmatprep.mubr.f32.mxu0 0.0
    %657 = vmatmul.mubr.f32.gmra.mrb[0].mxu0 %v477
    %v658 = vpop.f32.mrb[0].mxu0
    %v659 = vadd.f32 0.0, %v658
    %v660 = vpop.f32.mrb[0].mxu0
    %661 = vmatprep.mubr.f32.mxu0 0.0
    %662 = vmatmul.mubr.f32.gmra.mrb[0].mxu0 %v480
    %v663 = vpop.f32.mrb[0].mxu0
    %v664 = vadd.f32 0.0, %v663
    %v665 = vpop.f32.mrb[0].mxu0
    %666 = vdwg.mxu0
    %v667 = vld [vmem:[#allocation7] sm:$0xff]
    %v668 = vld [vmem:[#allocation7 + $0x8] sm:$0xff]
    %v669 = vld [vmem:[#allocation7 + $0x10] sm:$0xff]
    %v670 = vld [vmem:[#allocation7 + $0x18] sm:$0xff]
    %v671 = vld [vmem:[#allocation7 + $0x20] sm:$0xff]
    %v672 = vld [vmem:[#allocation7 + $0x28] sm:$0xff]
    %v673 = vld [vmem:[#allocation7 + $0x30] sm:$0xff]
    %v674 = vld [vmem:[#allocation7 + $0x38] sm:$0xff]
    %v676 = vsel %vm320, %v382, 0
    %v679 = vsel %vm320, %v383, 0
    %v682 = vsel %vm320, %v384, 0
    %v685 = vsel %vm320, %v385, 0
    %687 = vmatprep.subr.mxu0 %v668
    %688 = vmatpush1.msra.mxu0 %v667
    %689 = vmatprep.subr.mxu0 %v670
    %690 = vmatpush1.msra.mxu0 %v669
    %691 = vmatprep.subr.mxu0 %v672
    %692 = vmatpush1.msra.mxu0 %v671
    %693 = vmatprep.subr.mxu0 %v674
    %694 = vmatpush1.msra.mxu0 %v673
    %695 = vmatprep.subr.mxu0 0.0
    %696 = vmatpush1.msra.mxu0 0.0
    %697 = vmatprep.subr.mxu0 0.0
    %698 = vmatpush1.msra.mxu0 0.0
    %699 = vmatprep.subr.mxu0 0.0
    %700 = vmatpush1.msra.mxu0 0.0
    %701 = vmatprep.subr.mxu0 0.0
    %702 = vmatpush1.msra.mxu0 0.0
    %703 = vmatprep.subr.mxu0 0.0
    %704 = vmatpush1.msra.mxu0 0.0
    %705 = vmatprep.subr.mxu0 0.0
    %706 = vmatpush1.msra.mxu0 0.0
    %707 = vmatprep.subr.mxu0 0.0
    %708 = vmatpush1.msra.mxu0 0.0
    %709 = vmatprep.subr.mxu0 0.0
    %710 = vmatpush1.msra.mxu0 0.0
    %711 = vmatprep.subr.mxu0 0.0
    %712 = vmatpush1.msra.mxu0 0.0
    %713 = vmatprep.subr.mxu0 0.0
    %714 = vmatpush1.msra.mxu0 0.0
    %715 = vmatprep.subr.mxu0 0.0
    %716 = vmatpush1.msra.mxu0 0.0
    %717 = vmatprep.subr.mxu0 0.0
    %718 = vmatpush1.msra.mxu0 0.0
    %719 = vmatprep.subr.mxu0 0.0
    %720 = vmatpush1.msra.mxu0 0.0
    %721 = vmatprep.subr.mxu0 0.0
    %722 = vmatpush1.msra.mxu0 0.0
    %723 = vmatprep.subr.mxu0 0.0
    %724 = vmatpush1.msra.mxu0 0.0
    %725 = vmatprep.subr.mxu0 0.0
    %726 = vmatpush1.msra.mxu0 0.0
    %727 = vmatprep.subr.mxu0 0.0
    %728 = vmatpush1.msra.mxu0 0.0
    %729 = vmatprep.subr.mxu0 0.0
    %730 = vmatpush1.msra.mxu0 0.0
    %731 = vmatprep.subr.mxu0 0.0
    %732 = vmatpush1.msra.mxu0 0.0
    %733 = vmatprep.subr.mxu0 0.0
    %734 = vmatpush1.msra.mxu0 0.0
    %735 = vmatprep.subr.mxu0 0.0
    %736 = vmatpush1.msra.mxu0 0.0
    %737 = vmatprep.subr.mxu0 0.0
    %738 = vmatpush1.msra.mxu0 0.0
    %739 = vmatprep.subr.mxu0 0.0
    %740 = vmatpush1.msra.mxu0 0.0
    %741 = vmatprep.subr.mxu0 0.0
    %742 = vmatpush1.msra.mxu0 0.0
    %743 = vmatprep.subr.mxu0 0.0
    %744 = vmatpush1.msra.mxu0 0.0
    %745 = vmatprep.subr.mxu0 0.0
    %746 = vmatpush1.msra.mxu0 0.0
    %747 = vmatprep.subr.mxu0 0.0
    %748 = vmatpush1.msra.mxu0 0.0
    %749 = vmatprep.subr.mxu0 0.0
    %750 = vmatpush1.msra.mxu0 0.0
    %751 = vmatprep.mubr.f32.mxu0 0.0
    %752 = vmatmul.mubr.f32.gmra.mrb[0].mxu0 %v676
    %v753 = vpop.f32.mrb[0].mxu0
    %v754 = vadd.f32 0.0, %v753
    %v755 = vpop.f32.mrb[0].mxu0
    %v756 = vadd.f32 0.0, %v755
    %757 = vmatprep.mubr.f32.mxu0 0.0
    %758 = vmatmul.mubr.f32.gmra.mrb[0].mxu0 %v679
    %v759 = vpop.f32.mrb[0].mxu0
    %v760 = vadd.f32 0.0, %v759
    %v761 = vpop.f32.mrb[0].mxu0
    %v762 = vadd.f32 0.0, %v761
    %763 = vmatprep.mubr.f32.mxu0 0.0
    %764 = vmatmul.mubr.f32.gmra.mrb[0].mxu0 %v682
    %v765 = vpop.f32.mrb[0].mxu0
    %v766 = vadd.f32 0.0, %v765
    %v767 = vpop.f32.mrb[0].mxu0
    %v768 = vadd.f32 0.0, %v767
    %769 = vmatprep.mubr.f32.mxu0 0.0
    %770 = vmatmul.mubr.f32.gmra.mrb[0].mxu0 %v685
    %v771 = vpop.f32.mrb[0].mxu0
    %v772 = vadd.f32 0.0, %v771
    %v773 = vpop.f32.mrb[0].mxu0
    %v774 = vadd.f32 0.0, %v773
    %775 = vdwg.mxu0
    %v776 = vmul.f32 %v549, %v754
    %v777 = vmul.f32 %v554, %v760
    %v778 = vmul.f32 %v559, %v766
    %v779 = vmul.f32 %v564, %v772
    %v780 = vsel %vm320, %v776, 0.0
    %v781 = vsel %vm320, %v777, 0.0
    %v782 = vadd.f32 %v780, %v781
    %v783 = vsel %vm320, %v778, 0.0
    %v784 = vadd.f32 %v782, %v783
    %v785 = vsel %vm320, %v779, 0.0
    %v786 = vadd.f32 %v784, %v785
    %787 = vadd.xlane.f32.xlu0 %v786
    %v788 = vpop.xlane.xlu0 %787
    %v789 = vrot.slane %v788, 4
    %v790 = vadd.f32 %v788, %v789
    %v791 = vrot.slane %v790, 2
    %v792 = vadd.f32 %v790, %v791
    %v793 = vrot.slane %v792, 1
    %v794 = vadd.f32 %v792, %v793
    %s795 = vtos %v794
    %s796 = sadd.f32 %s795, 0.0
    %801 = vrot.lane.b32.xlu0 %v754, 96
    %v802 = vpop.permute.xlu0 %801
    %803 = vrot.lane.b32.xlu0 %v760, 96
    %v804 = vpop.permute.xlu0 %803
    %805 = vrot.lane.b32.xlu0 %v766, 96
    %v806 = vpop.permute.xlu0 %805
    %807 = vrot.lane.b32.xlu0 %v772, 96
    %v808 = vpop.permute.xlu0 %807
    %v813 = vmul.f32 %v569, %v802
    %v814 = vmul.f32 %v574, %v804
    %v815 = vmul.f32 %v579, %v806
    %v816 = vmul.f32 %v584, %v808
    %v817 = vsel %vm320, %v813, 0.0
    %v818 = vsel %vm320, %v814, 0.0
    %v819 = vadd.f32 %v817, %v818
    %v820 = vsel %vm320, %v815, 0.0
    %v821 = vadd.f32 %v819, %v820
    %v822 = vsel %vm320, %v816, 0.0
    %v823 = vadd.f32 %v821, %v822
    %824 = vadd.xlane.f32.xlu0 %v823
    %v825 = vpop.xlane.xlu0 %824
    %v826 = vrot.slane %v825, 4
    %v827 = vadd.f32 %v825, %v826
    %v828 = vrot.slane %v827, 2
    %v829 = vadd.f32 %v827, %v828
    %v830 = vrot.slane %v829, 1
    %v831 = vadd.f32 %v829, %v830
    %s832 = vtos %v831
    %s833 = sadd.f32 %s796, %s832
    %834 = vrot.lane.b32.xlu0 %v754, 64
    %v835 = vpop.permute.xlu0 %834
    %836 = vrot.lane.b32.xlu0 %v760, 64
    %v837 = vpop.permute.xlu0 %836
    %838 = vrot.lane.b32.xlu0 %v766, 64
    %v839 = vpop.permute.xlu0 %838
    %840 = vrot.lane.b32.xlu0 %v772, 64
    %v841 = vpop.permute.xlu0 %840
    %v846 = vmul.f32 %v589, %v835
    %v847 = vmul.f32 %v594, %v837
    %v848 = vmul.f32 %v599, %v839
    %v849 = vmul.f32 %v604, %v841
    %v850 = vsel %vm320, %v846, 0.0
    %v851 = vsel %vm320, %v847, 0.0
    %v852 = vadd.f32 %v850, %v851
    %v853 = vsel %vm320, %v848, 0.0
    %v854 = vadd.f32 %v852, %v853
    %v855 = vsel %vm320, %v849, 0.0
    %v856 = vadd.f32 %v854, %v855
    %857 = vadd.xlane.f32.xlu0 %v856
    %v858 = vpop.xlane.xlu0 %857
    %v859 = vrot.slane %v858, 4
    %v860 = vadd.f32 %v858, %v859
    %v861 = vrot.slane %v860, 2
    %v862 = vadd.f32 %v860, %v861
    %v863 = vrot.slane %v862, 1
    %v864 = vadd.f32 %v862, %v863
    %s865 = vtos %v864
    %s866 = sadd.f32 %s833, %s865
    %867 = vrot.lane.b32.xlu0 %v754, 32
    %v868 = vpop.permute.xlu0 %867
    %869 = vrot.lane.b32.xlu0 %v760, 32
    %v870 = vpop.permute.xlu0 %869
    %871 = vrot.lane.b32.xlu0 %v766, 32
    %v872 = vpop.permute.xlu0 %871
    %873 = vrot.lane.b32.xlu0 %v772, 32
    %v874 = vpop.permute.xlu0 %873
    %v879 = vmul.f32 %v609, %v868
    %v880 = vmul.f32 %v614, %v870
    %v881 = vmul.f32 %v619, %v872
    %v882 = vmul.f32 %v624, %v874
    %v883 = vsel %vm320, %v879, 0.0
    %v884 = vsel %vm320, %v880, 0.0
    %v885 = vadd.f32 %v883, %v884
    %v886 = vsel %vm320, %v881, 0.0
    %v887 = vadd.f32 %v885, %v886
    %v888 = vsel %vm320, %v882, 0.0
    %v889 = vadd.f32 %v887, %v888
    %890 = vadd.xlane.f32.xlu0 %v889
    %v891 = vpop.xlane.xlu0 %890
    %v892 = vrot.slane %v891, 4
    %v893 = vadd.f32 %v891, %v892
    %v894 = vrot.slane %v893, 2
    %v895 = vadd.f32 %v893, %v894
    %v896 = vrot.slane %v895, 1
    %v897 = vadd.f32 %v895, %v896
    %s898 = vtos %v897
    %s899 = sadd.f32 %s866, %s898
    %v900 = vmul.f32 %v629, %v756
    %v901 = vmul.f32 %v634, %v762
    %v902 = vmul.f32 %v639, %v768
    %v903 = vmul.f32 %v644, %v774
    %v904 = vsel %vm320, %v900, 0.0
    %v905 = vsel %vm320, %v901, 0.0
    %v906 = vadd.f32 %v904, %v905
    %v907 = vsel %vm320, %v902, 0.0
    %v908 = vadd.f32 %v906, %v907
    %v909 = vsel %vm320, %v903, 0.0
    %v910 = vadd.f32 %v908, %v909
    %911 = vadd.xlane.f32.xlu0 %v910
    %v912 = vpop.xlane.xlu0 %911
    %v913 = vrot.slane %v912, 4
    %v914 = vadd.f32 %v912, %v913
    %v915 = vrot.slane %v914, 2
    %v916 = vadd.f32 %v914, %v915
    %v917 = vrot.slane %v916, 1
    %v918 = vadd.f32 %v916, %v917
    %s919 = vtos %v918
    %s920 = sadd.f32 %s899, %s919
    %925 = vrot.lane.b32.xlu0 %v756, 96
    %v926 = vpop.permute.xlu0 %925
    %927 = vrot.lane.b32.xlu0 %v762, 96
    %v928 = vpop.permute.xlu0 %927
    %929 = vrot.lane.b32.xlu0 %v768, 96
    %v930 = vpop.permute.xlu0 %929
    %931 = vrot.lane.b32.xlu0 %v774, 96
    %v932 = vpop.permute.xlu0 %931
    %v937 = vmul.f32 %v649, %v926
    %v938 = vmul.f32 %v654, %v928
    %v939 = vmul.f32 %v659, %v930
    %v940 = vmul.f32 %v664, %v932
    %v941 = vsel %vm320, %v937, 0.0
    %v942 = vsel %vm320, %v938, 0.0
    %v943 = vadd.f32 %v941, %v942
    %v944 = vsel %vm320, %v939, 0.0
    %v945 = vadd.f32 %v943, %v944
    %v946 = vsel %vm320, %v940, 0.0
    %v947 = vadd.f32 %v945, %v946
    %948 = vadd.xlane.f32.xlu0 %v947
    %v949 = vpop.xlane.xlu0 %948
    %v950 = vrot.slane %v949, 4
    %v951 = vadd.f32 %v949, %v950
    %v952 = vrot.slane %v951, 2
    %v953 = vadd.f32 %v951, %v952
    %v954 = vrot.slane %v953, 1
    %v955 = vadd.f32 %v953, %v954
    %s956 = vtos %v955
    %s957 = sadd.f32 %s920, %s956
    %v958 = vrcp.pop 6.0
    %s959 = vtos %v958
    %s960 = smul.f32 %s957, %s959
    %v961 = vstv %s960
    %vm962 = vcmask 0
    %963 = vst.msk [vmem:[#allocation9] sm:$0x1] %vm962, %v961
    // Predicated region
    $region34: #{tpu_custom_call.1} parent=1 // pred_check
      _
    $region35: #{tpu_custom_call.1} parent=1 // pred_check_branch
      %965 = sbr.rel (0) target = $region37
    $region36: #{tpu_custom_call.1} parent=1 // pred_region
      %s967 = ssub.s32 128, 128
      %968 = vsyncadd [#allocation4], %s967
      %s970 = sshll.u32 [#allocation8], 4
      %s971 = int_to_ptr.vmem [resolvable:$true] %s970
      %973 = dma.vmem_to_hbm [thread:$0]  %s971, 128, %s5, [#allocation4]
    $region37: #{tpu_custom_call.1} parent=1 // pred_fallthru
      _
    // Predicated region
    $region38: #{tpu_custom_call.1} parent=1 // pred_check
      _
    $region39: #{tpu_custom_call.1} parent=1 // pred_check_branch
      %975 = sbr.rel (0) target = $region41
    $region40: #{tpu_custom_call.1} parent=1 // pred_region
      %s977 = ssub.s32 16, 16
      %978 = vsyncadd [#allocation10], %s977
      %s980 = sshll.u32 [#allocation9], 4
      %s981 = int_to_ptr.vmem [resolvable:$true] %s980
      %983 = dma.vmem_to_hbm [thread:$0]  %s981, 16, %s6, [#allocation10]
    $region41: #{tpu_custom_call.1} parent=1 // pred_fallthru
      _
    // Predicated region
    $region42: #{tpu_custom_call.1} parent=1 // pred_check
      _
    $region43: #{tpu_custom_call.1} parent=1 // pred_check_branch
      %985 = sbr.rel (0) target = $region45
    $region44: #{tpu_custom_call.1} parent=1 // pred_region
      %986 = dma.done [#allocation4], 128
    $region45: #{tpu_custom_call.1} parent=1 // pred_fallthru
      _
    // Predicated region
    $region46: #{tpu_custom_call.1} parent=1 // pred_check
      _
    $region47: #{tpu_custom_call.1} parent=1 // pred_check_branch
      %988 = sbr.rel (0) target = $region49
    $region48: #{tpu_custom_call.1} parent=1 // pred_region
      %989 = dma.done [#allocation10], 16
    $region49: #{tpu_custom_call.1} parent=1 // pred_fallthru
      _
    %990 = vsyncpa [#allocation3], 1
    %991 = vsyncpa [#allocation6], 1
    %992 = vsyncpa [#allocation4], 1
    %993 = vsyncpa [#allocation10], 1

</llo_original>
